<compile_context>
chip_gen: v7x
topology: tpu7x:2x2x1
jax: 0.10.0
libtpu: 0.0.40
codegen_flags: <defaults>
</compile_context>

<pallas_src>
import math

import jax
import jax.numpy as jnp
from jax import lax
from jax.experimental import pallas as pl
from jax.experimental.pallas import tpu as pltpu


_VMEM_CAP = 56 * 1024 * 1024            # safe budget on v7x (64 MiB physical VMEM)
_RESIDENT_WEIGHT_BYTES = 2 * 1024 * 1024  # threshold for the resident-weight fast path


def _round_up(x, m):
    return ((x + m - 1) // m) * m


def _choose_tile(dim, target, align):
    """Return (tile, padded_dim) with minimal padding.

    If the dim fits in one tile, use the full dim (always layout-legal).
    Otherwise split into ~equal pieces rounded up to `align`, instead of
    clipping to `target` and rounding the dim up to a tile multiple.
    """
    if dim <= target:
        return dim, dim
    n_splits = pl.cdiv(dim, target)
    tile = _round_up(pl.cdiv(dim, n_splits), align)
    return tile, _round_up(dim, tile)


def _linear_kernel_tiled(x_ref, w_ref, b_ref, o_ref, acc_ref):
    # x_ref: (tm, tk)  w_ref: (tk, tn)  b_ref: (1, tn)  o_ref: (tm, tn)
    k = pl.program_id(2)

    @pl.when(k == 0)
    def _():
        # Fold the bias into the accumulator init: one broadcast per output
        # tile, not one VPU add per K step.
        acc_ref[...] = jnp.broadcast_to(
            b_ref[...].astype(jnp.float32), acc_ref.shape)

    # Canonical (tm,tk) x (tk,tn) contraction on the MXU (weight pre-transposed).
    acc_ref[...] += jnp.dot(x_ref[...], w_ref[...],
                            preferred_element_type=jnp.float32)

    @pl.when(k == pl.num_programs(2) - 1)
    def _():
        o_ref[...] = acc_ref[...].astype(o_ref.dtype)


def _linear_kernel_resident(x_ref, w_ref, b_ref, o_ref):
    # Small-layer fast path: full (K, N) weight + bias stay resident in VMEM
    # (constant block index); grid runs over M tiles only, no K loop/scratch.
    acc = jnp.dot(x_ref[...], w_ref[...], preferred_element_type=jnp.float32)
    o_ref[...] = (acc + b_ref[...].astype(jnp.float32)).astype(o_ref.dtype)


def linear_pallas(x, w_t, bias, *, tm_target=1024, tn_target=1024, tk_target=512):
    """y = x @ w_t + bias  (== torch nn.Linear with weight = w_t.T).

    x: (..., in_dim); w_t: (in_dim, out_dim) — the torch (out_dim, in_dim)
    weight pre-transposed once at parameter-creation time; bias: (out_dim,).
    """
    K, N = w_t.shape
    assert x.shape[-1] == K
    lead_shape = x.shape[:-1]
    M = int(math.prod(lead_shape)) if lead_shape else 1

    x2d = x.reshape(M, K)
    b2d = bias.reshape(1, N)

    x_is = jnp.dtype(x.dtype).itemsize
    w_is = jnp.dtype(w_t.dtype).itemsize
    b_is = jnp.dtype(bias.dtype).itemsize
    o_is = x_is

    # ---------------- small-layer fast path: weight resident in VMEM ----------------
    tm_f, M_pad_f = _choose_tile(M, 512, 8)
    resident_bytes = (K * N * w_is + N * b_is
                      + 2 * tm_f * K * x_is + 2 * tm_f * N * o_is)
    if K * N * w_is <= _RESIDENT_WEIGHT_BYTES and resident_bytes <= _VMEM_CAP:
        tm, M_pad = tm_f, M_pad_f
        x_in = x2d if M_pad == M else jnp.pad(x2d, ((0, M_pad - M), (0, 0)))
        cost = pl.CostEstimate(
            flops=2 * M_pad * K * N, transcendentals=0,
            bytes_accessed=(M_pad * K * x_is + K * N * w_is + N * b_is
                            + M_pad * N * o_is))
        out = pl.pallas_call(
            _linear_kernel_resident,
            out_shape=jax.ShapeDtypeStruct((M_pad, N), x.dtype),
            grid_spec=pltpu.PrefetchScalarGridSpec(
                num_scalar_prefetch=0,
                grid=(M_pad // tm,),
                in_specs=[
                    pl.BlockSpec((tm, K), lambda i: (i, 0)),   # x M-tile
                    pl.BlockSpec((K, N), lambda i: (0, 0)),    # weight, resident
                    pl.BlockSpec((1, N), lambda i: (0, 0)),    # bias, resident
                ],
                out_specs=pl.BlockSpec((tm, N), lambda i: (i, 0)),
            ),
            compiler_params=pltpu.CompilerParams(
                dimension_semantics=("parallel",),
                vmem_limit_bytes=int(min(max(resident_bytes + (8 << 20),
                                             32 << 20), _VMEM_CAP)),
            ),
            cost_estimate=cost,
        )(x_in, w_t, b2d)
        if M_pad != M:
            out = out[:M]
        return out.reshape(*lead_shape, N)

    # ---------------- general path: 3-axis grid + f32 VMEM accumulator ----------------
    tm, M_pad = _choose_tile(M, tm_target, 8)
    tn, N_pad = _choose_tile(N, tn_target, 128)
    tk, K_pad = _choose_tile(K, tk_target, 128)

    w2d = w_t
    if (M_pad, K_pad) != (M, K):
        x2d = jnp.pad(x2d, ((0, M_pad - M), (0, K_pad - K)))
    if (K_pad, N_pad) != (K, N):
        # Zero pads keep the K reduction exact (padded rows/cols contribute 0).
        # TODO(synk): for repeated calls, pre-pad the weight once at
        # parameter-creation time instead of per forward call.
        w2d = jnp.pad(w2d, ((0, K_pad - K), (0, N_pad - N)))
    if N_pad != N:
        b2d = jnp.pad(b2d, ((0, 0), (0, N_pad - N)))

    grid = (M_pad // tm, N_pad // tn, K_pad // tk)

    # Double-buffered inputs + double-buffered output + f32 accumulator scratch.
    vmem_bytes = (2 * (tm * tk * x_is + tk * tn * w_is + tn * b_is)
                  + 2 * tm * tn * o_is
                  + tm * tn * 4)
    vmem_limit = int(min(max(vmem_bytes + (16 << 20), 32 << 20), _VMEM_CAP))

    cost = pl.CostEstimate(
        flops=2 * M_pad * K_pad * N_pad,
        transcendentals=0,
        bytes_accessed=(M_pad * K_pad * x_is + K_pad * N_pad * w_is
                        + N_pad * b_is + M_pad * N_pad * o_is))

    out = pl.pallas_call(
        _linear_kernel_tiled,
        out_shape=jax.ShapeDtypeStruct((M_pad, N_pad), x.dtype),
        grid_spec=pltpu.PrefetchScalarGridSpec(
            num_scalar_prefetch=0,
            grid=grid,
            in_specs=[
                pl.BlockSpec((tm, tk), lambda i, j, k: (i, k)),   # x tile
                pl.BlockSpec((tk, tn), lambda i, j, k: (k, j)),   # weight tile (K,N)
                pl.BlockSpec((1, tn), lambda i, j, k: (0, j)),    # bias tile
            ],
            out_specs=pl.BlockSpec((tm, tn), lambda i, j, k: (i, j)),
            scratch_shapes=[pltpu.VMEM((tm, tn), jnp.float32)],
        ),
        compiler_params=pltpu.CompilerParams(
            dimension_semantics=("parallel", "parallel", "arbitrary"),
            vmem_limit_bytes=vmem_limit,
        ),
        cost_estimate=cost,
    )(x2d, w2d, b2d)

    if (M_pad, N_pad) != (M, N):
        out = out[:M, :N]
    return out.reshape(*lead_shape, N)


def make_linear_params(key, in_dim, out_dim, dtype=jnp.float32):
    """Matches init_linear: xavier_normal weight (out_dim, in_dim), zero bias.

    Returns the weight PRE-TRANSPOSED to (in_dim, out_dim) — done once here at
    parameter-creation time so the kernel never transposes per call/tile.
    """
    std = math.sqrt(2.0 / (in_dim + out_dim))
    weight = std * jax.random.normal(key, (out_dim, in_dim), dtype=dtype)
    w_t = weight.T
    bias = jnp.zeros((out_dim,), dtype=dtype)
    return w_t, bias


if __name__ == "__main__":
    key = jax.random.PRNGKey(0)
    keys = jax.random.split(key, 6)

    # 1) Small demo (fast path: weight resident in VMEM, M-only grid).
    batch, seq, in_dim, out_dim = 2, 8, 32, 32
    x = jax.random.normal(keys[0], (batch, seq, in_dim), dtype=jnp.float32)
    w_t, bias = make_linear_params(keys[1], in_dim, out_dim)
    y = jax.block_until_ready(linear_pallas(x, w_t, bias))
    y_ref = jnp.matmul(x, w_t, precision=lax.Precision.HIGHEST) + bias
    assert y.shape == (batch, seq, out_dim)
    assert jnp.allclose(y, y_ref, atol=1e-5, rtol=1e-5)

    # 2) Fast path with M tiling + padding and non-128-aligned K/N.
    b2, s2, in2, out2 = 2, 650, 96, 80        # M=1300 -> tm=440, M_pad=1320
    x2 = jax.random.normal(keys[2], (b2, s2, in2), dtype=jnp.float32)
    w2_t, bias2 = make_linear_params(keys[3], in2, out2)
    y2 = jax.block_until_ready(linear_pallas(x2, w2_t, bias2))
    y2_ref = jnp.matmul(x2, w2_t, precision=lax.Precision.HIGHEST) + bias2
    assert y2.shape == (b2, s2, out2)
    assert jnp.allclose(y2, y2_ref, atol=1e-4, rtol=1e-4)

    # 3) General tiled path (3-axis grid, K accumulation), zero padding waste:
    #    M=1280 -> tm=640 (2 tiles), K=1024 -> tk=512 (2 K steps), N=640 full tile.
    b3, s3, in3, out3 = 2, 640, 1024, 640
    x3 = jax.random.normal(keys[4], (b3, s3, in3), dtype=jnp.float32)
    w3_t, bias3 = make_linear_params(keys[5], in3, out3)
    y3 = jax.block_until_ready(linear_pallas(x3, w3_t, bias3))
    y3_ref = jnp.matmul(x3, w3_t, precision=lax.Precision.HIGHEST) + bias3
    assert y3.shape == (b3, s3, out3)
    assert jnp.allclose(y3, y3_ref, atol=1e-3, rtol=1e-3)

    print("KERNEL_OK")
</pallas_src>

<mosaic_0001>
module attributes {stable_mosaic.version = 11 : i64} {
  func.func @_linear_kernel_resident(%arg0: i32, %arg1: memref<16x32xf32, #tpu.memory_space<vmem>>, %arg2: memref<32x32xf32, #tpu.memory_space<vmem>>, %arg3: memref<1x32xf32, #tpu.memory_space<vmem>>, %arg4: memref<16x32xf32, #tpu.memory_space<vmem>>) attributes {dimension_semantics = [#tpu.dimension_semantics<parallel>], iteration_bounds = array<i64: 1>, scalar_prefetch = 0 : i64, scratch_operands = 0 : i64, tpu.core_type = #tpu.core_type<tc>, window_params = [{transform_indices = @transform_0, window_bounds = array<i64: 16, 32>}, {pipeline_mode = #tpu.pipeline_mode<synchronous>, transform_indices = @transform_1, window_bounds = array<i64: 32, 32>}, {pipeline_mode = #tpu.pipeline_mode<synchronous>, transform_indices = @transform_2, window_bounds = array<i64: 1, 32>}, {transform_indices = @transform_3, window_bounds = array<i64: 16, 32>}]} {
    %c0 = arith.constant 0 : index
    %c0_0 = arith.constant 0 : index
    %0 = vector.load %arg1[%c0, %c0_0] : memref<16x32xf32, #tpu.memory_space<vmem>>, vector<16x32xf32>
    %c0_1 = arith.constant 0 : index
    %c0_2 = arith.constant 0 : index
    %1 = vector.load %arg2[%c0_1, %c0_2] : memref<32x32xf32, #tpu.memory_space<vmem>>, vector<32x32xf32>
    %cst = arith.constant dense<0.000000e+00> : vector<16x32xf32>
    %2 = tpu.matmul %0, %1, %cst {dimension_numbers = #tpu.dot_dimension_numbers<[1], [0], [0], [1], [0, 0, 1, 1], [], []>} : vector<16x32xf32>, vector<32x32xf32>, vector<16x32xf32> -> vector<16x32xf32>
    %c0_3 = arith.constant 0 : index
    %c0_4 = arith.constant 0 : index
    %3 = vector.load %arg3[%c0_3, %c0_4] : memref<1x32xf32, #tpu.memory_space<vmem>>, vector<1x32xf32>
    %4 = vector.broadcast %3 : vector<1x32xf32> to vector<16x32xf32>
    %5 = arith.addf %2, %4 : vector<16x32xf32>
    %c0_5 = arith.constant 0 : index
    %c0_6 = arith.constant 0 : index
    %6 = vector.load %arg4[%c0_5, %c0_6] : memref<16x32xf32, #tpu.memory_space<vmem>>, vector<16x32xf32>
    tpu.vector_store %arg4[%c0_5, %c0_6], %5 {strides = array<i32>} : memref<16x32xf32, #tpu.memory_space<vmem>>, vector<16x32xf32>,
    return
  }
  func.func @transform_0(%arg0: i32) -> (i32, i32) {
    %c0_i32 = arith.constant 0 : i32
    %c0_i32_0 = arith.constant 0 : i32
    return %arg0, %c0_i32 : i32, i32
  }
  func.func @transform_1(%arg0: i32) -> (i32, i32) {
    %c0_i32 = arith.constant 0 : i32
    %c0_i32_0 = arith.constant 0 : i32
    %c0_i32_1 = arith.constant 0 : i32
    return %c0_i32, %c0_i32_0 : i32, i32
  }
  func.func @transform_2(%arg0: i32) -> (i32, i32) {
    %c0_i32 = arith.constant 0 : i32
    %c0_i32_0 = arith.constant 0 : i32
    %c0_i32_1 = arith.constant 0 : i32
    return %c0_i32, %c0_i32_0 : i32, i32
  }
  func.func @transform_3(%arg0: i32) -> (i32, i32) {
    %c0_i32 = arith.constant 0 : i32
    %c0_i32_0 = arith.constant 0 : i32
    return %arg0, %c0_i32 : i32, i32
  }
}

</mosaic_0001>

<llo_original>
// kernel: tpu_custom_call.1
$region0: #{tpu_custom_call.1}
  #allocation0 [shape = 'u32[]', space=smem, size = 0x4, offset = 0x4, fixed_abs, tag = 'smem constant byte address 0x4 - core index']
  #allocation1 [shape = 'u32[144,128]{1,0:T(1,128)}', space=vmem, size = 0x12000, scoped, tag = 'internal scratch']
  %s0 = inlined_call_operand.hbm [shape: f32[16,32], index: 0, kind: input, shape index: {}]
  %s1 = inlined_call_operand.hbm [shape: f32[32,32], index: 1, kind: input, shape index: {}]
  %s2 = inlined_call_operand.vmem [shape: f32[1,32], index: 2, kind: input, shape index: {}]
  %s3 = inlined_call_operand.hbm [shape: f32[16,32], index: 3, kind: output, shape index: {}]
  %s4 = sld [smem:[#allocation0]]
  $region30: #{tpu_custom_call.1} parent=0
    _
  %s6 = ssub.s32 1, %s4
  %s7 = scalar_select 0, %s6, %s4
  $region1: #{tpu_custom_call.1} parent=0
    #allocation2 [shape = 'u8[8192]{0}', space=vmem, size = 0x2000, scoped, tag = 'input window, operand 0, single buffered']
    #allocation3 [shape = 's32[1]{0}', space=sflag, size = 0x4, scoped, tag = 'scoped memory for tpu_custom_call.1']
    #allocation4 [shape = 's32[1]{0}', space=sflag, size = 0x4, scoped, tag = 'scoped memory for tpu_custom_call.1']
    #allocation5 [shape = 'u8[16384]{0}', space=vmem, size = 0x4000, scoped, tag = 'input window, operand 1, single buffered']
    #allocation6 [shape = 's32[1]{0}', space=sflag, size = 0x4, scoped, tag = 'scoped memory for tpu_custom_call.1']
    #allocation7 [shape = 'u8[8192]{0}', space=vmem, size = 0x2000, scoped, tag = 'output window, operand 0, single buffered']
    %8 = vsyncpa [#allocation3], 0
    %9 = vsyncpa [#allocation6], 0
    %10 = vsyncpa [#allocation4], 0
    // Predicated region
    $region2: #{tpu_custom_call.1} parent=1 // pred_check
      _
    $region3: #{tpu_custom_call.1} parent=1 // pred_check_branch
      %12 = sbr.rel (0) target = $region5
    $region4: #{tpu_custom_call.1} parent=1 // pred_region
      %s14 = ssub.s32 256, 256
      %15 = vsyncadd [#allocation3], %s14
      %s16 = sshll.u32 [#allocation2], 4
      %s17 = int_to_ptr.vmem [resolvable:$true] %s16
      %22 = dma.hbm_to_vmem [thread:$0]  %s0, 256, %s17, [#allocation3], 128, 128, 8
    $region5: #{tpu_custom_call.1} parent=1 // pred_fallthru
      _
    // Predicated region
    $region6: #{tpu_custom_call.1} parent=1 // pred_check
      _
    $region7: #{tpu_custom_call.1} parent=1 // pred_check_branch
      %24 = sbr.rel (0) target = $region9
    $region8: #{tpu_custom_call.1} parent=1 // pred_region
      %s26 = ssub.s32 512, 512
      %27 = vsyncadd [#allocation6], %s26
      %s28 = sshll.u32 [#allocation5], 4
      %s29 = int_to_ptr.vmem [resolvable:$true] %s28
      %34 = dma.hbm_to_vmem [thread:$0]  %s1, 512, %s29, [#allocation6], 128, 128, 8
    $region9: #{tpu_custom_call.1} parent=1 // pred_fallthru
      _
    // Predicated region
    $region10: #{tpu_custom_call.1} parent=1 // pred_check
      _
    $region11: #{tpu_custom_call.1} parent=1 // pred_check_branch
      %36 = sbr.rel (0) target = $region13
    $region12: #{tpu_custom_call.1} parent=1 // pred_region
      _
    $region13: #{tpu_custom_call.1} parent=1 // pred_fallthru
      _
    // Predicated region
    $region14: #{tpu_custom_call.1} parent=1 // pred_check
      _
    $region15: #{tpu_custom_call.1} parent=1 // pred_check_branch
      %38 = sbr.rel (0) target = $region17
    $region16: #{tpu_custom_call.1} parent=1 // pred_region
      %39 = dma.done [#allocation3], 256
    $region17: #{tpu_custom_call.1} parent=1 // pred_fallthru
      _
    // Predicated region
    $region18: #{tpu_custom_call.1} parent=1 // pred_check
      _
    $region19: #{tpu_custom_call.1} parent=1 // pred_check_branch
      %41 = sbr.rel (0) target = $region21
    $region20: #{tpu_custom_call.1} parent=1 // pred_region
      %42 = dma.done [#allocation6], 512
    $region21: #{tpu_custom_call.1} parent=1 // pred_fallthru
      _
    %v43 = vld [vmem:[#allocation2] sm:$0xff]
    %v44 = vld [vmem:[#allocation2 + $0x8] sm:$0xff]
    %v45 = vld [vmem:[#allocation5] sm:$0xff]
    %v46 = vld [vmem:[#allocation5 + $0x8] sm:$0xff]
    %v47 = vld [vmem:[#allocation5 + $0x10] sm:$0xff]
    %v48 = vld [vmem:[#allocation5 + $0x18] sm:$0xff]
    %v49 = vld [vmem:[%s2] sm:$0x1]
    %v51 = vlaneseq
    %v52 = vshrl.u32 %v51, 7
    %v53 = vsub.s32 0, %v52
    %v54 = vrot.slane %v49, %v53
    %vm56 = vcmask 261120
    %v58 = vsel %vm56, %v43, 0
    %v61 = vsel %vm56, %v44, 0
    %63 = vmatprep.subr.mxu0 0.0
    %64 = vmatpush1.msra.mxu0 %v45
    %65 = vmatprep.subr.mxu0 0.0
    %66 = vmatpush1.msra.mxu0 %v46
    %67 = vmatprep.subr.mxu0 0.0
    %68 = vmatpush1.msra.mxu0 %v47
    %69 = vmatprep.subr.mxu0 0.0
    %70 = vmatpush1.msra.mxu0 %v48
    %71 = vmatprep.subr.mxu0 0.0
    %72 = vmatpush1.msra.mxu0 0.0
    %73 = vmatprep.subr.mxu0 0.0
    %74 = vmatpush1.msra.mxu0 0.0
    %75 = vmatprep.subr.mxu0 0.0
    %76 = vmatpush1.msra.mxu0 0.0
    %77 = vmatprep.subr.mxu0 0.0
    %78 = vmatpush1.msra.mxu0 0.0
    %79 = vmatprep.subr.mxu0 0.0
    %80 = vmatpush1.msra.mxu0 0.0
    %81 = vmatprep.subr.mxu0 0.0
    %82 = vmatpush1.msra.mxu0 0.0
    %83 = vmatprep.subr.mxu0 0.0
    %84 = vmatpush1.msra.mxu0 0.0
    %85 = vmatprep.subr.mxu0 0.0
    %86 = vmatpush1.msra.mxu0 0.0
    %87 = vmatprep.subr.mxu0 0.0
    %88 = vmatpush1.msra.mxu0 0.0
    %89 = vmatprep.subr.mxu0 0.0
    %90 = vmatpush1.msra.mxu0 0.0
    %91 = vmatprep.subr.mxu0 0.0
    %92 = vmatpush1.msra.mxu0 0.0
    %93 = vmatprep.subr.mxu0 0.0
    %94 = vmatpush1.msra.mxu0 0.0
    %95 = vmatprep.subr.mxu0 0.0
    %96 = vmatpush1.msra.mxu0 0.0
    %97 = vmatprep.subr.mxu0 0.0
    %98 = vmatpush1.msra.mxu0 0.0
    %99 = vmatprep.subr.mxu0 0.0
    %100 = vmatpush1.msra.mxu0 0.0
    %101 = vmatprep.subr.mxu0 0.0
    %102 = vmatpush1.msra.mxu0 0.0
    %103 = vmatprep.subr.mxu0 0.0
    %104 = vmatpush1.msra.mxu0 0.0
    %105 = vmatprep.subr.mxu0 0.0
    %106 = vmatpush1.msra.mxu0 0.0
    %107 = vmatprep.subr.mxu0 0.0
    %108 = vmatpush1.msra.mxu0 0.0
    %109 = vmatprep.subr.mxu0 0.0
    %110 = vmatpush1.msra.mxu0 0.0
    %111 = vmatprep.subr.mxu0 0.0
    %112 = vmatpush1.msra.mxu0 0.0
    %113 = vmatprep.subr.mxu0 0.0
    %114 = vmatpush1.msra.mxu0 0.0
    %115 = vmatprep.subr.mxu0 0.0
    %116 = vmatpush1.msra.mxu0 0.0
    %117 = vmatprep.subr.mxu0 0.0
    %118 = vmatpush1.msra.mxu0 0.0
    %119 = vmatprep.subr.mxu0 0.0
    %120 = vmatpush1.msra.mxu0 0.0
    %121 = vmatprep.subr.mxu0 0.0
    %122 = vmatpush1.msra.mxu0 0.0
    %123 = vmatprep.subr.mxu0 0.0
    %124 = vmatpush1.msra.mxu0 0.0
    %125 = vmatprep.subr.mxu0 0.0
    %126 = vmatpush1.msra.mxu0 0.0
    %127 = vmatprep.mubr.f32.mxu0 0.0
    %128 = vmatmul.mubr.f32.gmra.mrb[0].mxu0 %v58
    %v129 = vpop.f32.mrb[0].mxu0
    %v130 = vadd.f32 %v54, %v129
    %v131 = vpop.f32.mrb[0].mxu0
    %132 = vmatprep.mubr.f32.mxu0 0.0
    %133 = vmatmul.mubr.f32.gmra.mrb[0].mxu0 %v61
    %v134 = vpop.f32.mrb[0].mxu0
    %v135 = vadd.f32 %v54, %v134
    %v136 = vpop.f32.mrb[0].mxu0
    %137 = vdwg.mxu0
    %138 = vst.msk [vmem:[#allocation7] sm:$0xff] %vm56, %v130
    %139 = vst.msk [vmem:[#allocation7 + $0x8] sm:$0xff] %vm56, %v135
    // Predicated region
    $region22: #{tpu_custom_call.1} parent=1 // pred_check
      _
    $region23: #{tpu_custom_call.1} parent=1 // pred_check_branch
      %141 = sbr.rel (0) target = $region25
    $region24: #{tpu_custom_call.1} parent=1 // pred_region
      %s143 = ssub.s32 256, 256
      %144 = vsyncadd [#allocation4], %s143
      %s145 = sshll.u32 [#allocation7], 4
      %s146 = int_to_ptr.vmem [resolvable:$true] %s145
      %151 = dma.vmem_to_hbm [thread:$0]  %s146, 256, %s3, [#allocation4], 128, 128, 8
    $region25: #{tpu_custom_call.1} parent=1 // pred_fallthru
      _
    // Predicated region
    $region26: #{tpu_custom_call.1} parent=1 // pred_check
      _
    $region27: #{tpu_custom_call.1} parent=1 // pred_check_branch
      %153 = sbr.rel (0) target = $region29
    $region28: #{tpu_custom_call.1} parent=1 // pred_region
      %154 = dma.done [#allocation4], 256
    $region29: #{tpu_custom_call.1} parent=1 // pred_fallthru
      _
    %155 = vsyncpa [#allocation3], 1
    %156 = vsyncpa [#allocation6], 1
    %157 = vsyncpa [#allocation4], 1

</llo_original>
